<compile_context>
chip_gen: v5e
topology: v5e:2x2
jax: 0.10.0
libtpu: 0.0.40
codegen_flags: <defaults>
</compile_context>

<pallas_src>
import functools
import math

import jax
import jax.numpy as jnp
from jax import lax
from jax.experimental import pallas as pl
from jax.experimental.pallas import tpu as pltpu


def _round_up(a, b):
    return ((a + b - 1) // b) * b


def _cdiv(a, b):
    return (a + b - 1) // b


def _logits_stats_kernel(x_ref, w_ref, b_ref, logits_ref, m_ref, l_ref,
                         acc_ref, *, E, V, tk, tv, e_ragged, v_ragged):
    """Pass A: logits = x @ W^T + b (K-tiled), plus running row max / sumexp."""
    j = pl.program_id(1)          # vocab tile
    k = pl.program_id(2)          # contraction tile
    nk = pl.num_programs(2)

    x = x_ref[...]                # [tm, tk]
    w = w_ref[...]                # [tv, tk]  (PyTorch [V, E] layout slab)
    if e_ragged:
        # Zero out-of-range contraction columns so garbage from the padded
        # last K block never reaches the MXU (mask both operands -> 0 * 0).
        cx = lax.broadcasted_iota(jnp.int32, x.shape, 1) + k * tk
        x = jnp.where(cx < E, x, jnp.zeros_like(x))
        cw = lax.broadcasted_iota(jnp.int32, w.shape, 1) + k * tk
        w = jnp.where(cw < E, w, jnp.zeros_like(w))

    # Rhs-transposed matmul: [tm, tk] x [tv, tk]^T -> [tm, tv], f32 accumulate.
    d = lax.dot_general(x, w, (((1,), (1,)), ((), ())),
                        preferred_element_type=jnp.float32)

    # Fuse the bias into the first K step (bias applied exactly once; no
    # separate broadcast-store followed by a read-modify-write pass).
    @pl.when(k == 0)
    def _():
        acc_ref[...] = d + jnp.broadcast_to(
            b_ref[...].astype(jnp.float32), acc_ref.shape)

    @pl.when(k != 0)
    def _():
        acc_ref[...] = acc_ref[...] + d

    # Running softmax stats live in the (tm, 1) output blocks, which stay
    # VMEM-resident for all (j, k) steps of a given m tile.
    @pl.when(jnp.logical_and(j == 0, k == 0))
    def _():
        m_ref[...] = jnp.full(m_ref.shape, -jnp.inf, jnp.float32)
        l_ref[...] = jnp.zeros(l_ref.shape, jnp.float32)

    @pl.when(k == nk - 1)
    def _():
        logits = acc_ref[...]                                    # [tm, tv] f32
        if v_ragged:
            # Out-of-range vocab columns of the last V tile -> -inf so they do
            # not pollute the row max / sum (their stores are masked anyway).
            cv = lax.broadcasted_iota(jnp.int32, logits.shape, 1) + j * tv
            logits = jnp.where(cv < V, logits, -jnp.inf)
        logits_ref[...] = logits.astype(logits_ref.dtype)

        m_prev = m_ref[...]                                      # [tm, 1]
        m_new = jnp.maximum(m_prev, jnp.max(logits, axis=-1, keepdims=True))
        alpha = jnp.exp(m_prev - m_new)
        l_ref[...] = l_ref[...] * alpha + jnp.sum(
            jnp.exp(logits - m_new), axis=-1, keepdims=True)
        m_ref[...] = m_new


def _normalize_kernel(logits_ref, m_ref, l_ref, o_ref):
    """Pass B: probs = exp(logits - m) / l (exact normalization)."""
    e = jnp.exp(logits_ref[...] - m_ref[...])
    inv_l = 1.0 / l_ref[...]          # exact; approx EUP recip broke sum==1
    o_ref[...] = (e * inv_l).astype(o_ref.dtype)


def output_linear(x, weight, bias, *, tile_m=512, tile_v=512, tile_k=512,
                  logits_dtype=jnp.float32):
    """softmax(x @ weight.T + bias, axis=-1).

    x: [..., E]; weight: [V, E] (PyTorch nn.Linear layout, no host transpose);
    bias: [V]. Pass bf16 x/weight for full MXU rate (accumulation stays f32).
    """
    *lead, E = x.shape
    V, E_w = weight.shape
    assert E_w == E, (E_w, E)
    M = int(math.prod(lead)) if lead else 1

    x2 = x.reshape(M, E)
    b2 = bias.reshape(1, V)

    # --- tile selection: last block dims must be multiples of 128 (or the
    # full dim); sublane dims multiples of 8 (or the full dim). -------------
    tm = min(_round_up(M, 8), _round_up(max(tile_m, 8), 8))
    tv = V if V <= tile_v else max(128, (tile_v // 128) * 128)
    tk = E if E <= tile_k else max(128, (tile_k // 128) * 128)

    # --- VMEM budget from the actual chip (target ~80% of physical). -------
    try:
        vmem_cap = int(pltpu.get_tpu_info().vmem_capacity_bytes)
    except Exception:
        vmem_cap = 128 * 1024 * 1024
    vmem_budget = int(vmem_cap * 0.8)

    x_bytes = jnp.dtype(x.dtype).itemsize
    w_bytes = jnp.dtype(weight.dtype).itemsize
    lg_bytes = jnp.dtype(logits_dtype).itemsize
    o_bytes = jnp.dtype(x.dtype).itemsize

    def _vmem_est(tm_, tv_, tk_):
        # pass A: double-buffered inputs/outputs + f32 accumulator scratch
        a = (2 * (tm_ * tk_ * x_bytes + tv_ * tk_ * w_bytes + tv_ * x_bytes)
             + 2 * (tm_ * tv_ * lg_bytes + 2 * tm_ * 4)
             + tm_ * tv_ * 4)
        # pass B: double-buffered logits/stats in + probs out
        b = (2 * (tm_ * tv_ * lg_bytes + 2 * tm_ * 4)
             + 2 * tm_ * tv_ * o_bytes)
        return max(a, b)

    # Shrink tiles (contraction first, then vocab, then rows) to fit budget.
    while _vmem_est(tm, tv, tk) > vmem_budget:
        if tk > 128 and tk % 128 == 0:
            tk = max(128, ((tk // 2) // 128) * 128)
        elif tv > 128 and tv % 128 == 0:
            tv = max(128, ((tv // 2) // 128) * 128)
        elif tm > 8:
            tm = max(8, _round_up(tm // 2, 8))
        else:
            break

    num_m = _cdiv(M, tm)
    num_v = _cdiv(V, tv)
    num_k = _cdiv(E, tk)
    e_ragged = (E % tk) != 0
    v_ragged = (V % tv) != 0

    kernel_a = functools.partial(_logits_stats_kernel, E=E, V=V, tk=tk, tv=tv,
                                 e_ragged=e_ragged, v_ragged=v_ragged)
    vmem_limit = vmem_budget

    # ---- pass A: logits + online softmax stats -----------------------------
    logits, row_max, row_sum = pl.pallas_call(
        kernel_a,
        out_shape=(
            jax.ShapeDtypeStruct((M, V), logits_dtype),
            jax.ShapeDtypeStruct((M, 1), jnp.float32),
            jax.ShapeDtypeStruct((M, 1), jnp.float32),
        ),
        grid_spec=pltpu.PrefetchScalarGridSpec(
            num_scalar_prefetch=0,
            grid=(num_m, num_v, num_k),
            in_specs=[
                pl.BlockSpec((tm, tk), lambda i, j, k: (i, k)),   # activations
                pl.BlockSpec((tv, tk), lambda i, j, k: (j, k)),   # weight [V,E]
                pl.BlockSpec((1, tv), lambda i, j, k: (0, j)),    # bias row
            ],
            out_specs=[
                pl.BlockSpec((tm, tv), lambda i, j, k: (i, j)),   # logits
                pl.BlockSpec((tm, 1), lambda i, j, k: (i, 0)),    # running max
                pl.BlockSpec((tm, 1), lambda i, j, k: (i, 0)),    # running sum
            ],
            scratch_shapes=[pltpu.VMEM((tm, tv), jnp.float32)],
        ),
        compiler_params=pltpu.CompilerParams(
            dimension_semantics=("parallel", "arbitrary", "arbitrary"),
            vmem_limit_bytes=vmem_limit,
        ),
        cost_estimate=pl.CostEstimate(
            flops=2 * M * E * V,
            transcendentals=M * V,
            bytes_accessed=(M * E * x_bytes + num_m * V * E * w_bytes
                            + V * w_bytes + M * V * lg_bytes + 2 * M * 4),
        ),
    )(x2, weight, b2)

    # ---- pass B: normalize --------------------------------------------------
    probs = pl.pallas_call(
        _normalize_kernel,
        out_shape=jax.ShapeDtypeStruct((M, V), x.dtype),
        grid_spec=pltpu.PrefetchScalarGridSpec(
            num_scalar_prefetch=0,
            grid=(num_m, num_v),
            in_specs=[
                pl.BlockSpec((tm, tv), lambda i, j: (i, j)),
                pl.BlockSpec((tm, 1), lambda i, j: (i, 0)),
                pl.BlockSpec((tm, 1), lambda i, j: (i, 0)),
            ],
            out_specs=pl.BlockSpec((tm, tv), lambda i, j: (i, j)),
        ),
        compiler_params=pltpu.CompilerParams(
            dimension_semantics=("parallel", "parallel"),
            vmem_limit_bytes=vmem_limit,
        ),
        cost_estimate=pl.CostEstimate(
            flops=2 * M * V,
            transcendentals=M * V,
            bytes_accessed=M * V * (lg_bytes + o_bytes) + 2 * M * 4,
        ),
    )(logits, row_max, row_sum)

    return probs.reshape(*lead, V)


if __name__ == "__main__":
    key = jax.random.PRNGKey(0)

    # --- Test 1: spec-sized problem (embed=32, vocab=128, batch=2, seq=8) ---
    embed_size, vocab_size, batch, seq = 32, 128, 2, 8
    k1, k2, k3, key = jax.random.split(key, 4)
    bound = 1.0 / (embed_size ** 0.5)
    x = jax.random.normal(k1, (batch, seq, embed_size), dtype=jnp.float32)
    weight = jax.random.uniform(k2, (vocab_size, embed_size),
                                minval=-bound, maxval=bound, dtype=jnp.float32)
    bias = jax.random.uniform(k3, (vocab_size,),
                              minval=-bound, maxval=bound, dtype=jnp.float32)

    probs = jax.block_until_ready(output_linear(x, weight, bias))
    ref = jax.nn.softmax(x @ weight.T + bias, axis=-1)
    assert probs.shape == (batch, seq, vocab_size)
    assert jnp.allclose(probs, ref, atol=1e-3, rtol=1e-3)
    assert jnp.allclose(jnp.sum(probs, axis=-1), 1.0, atol=1e-3)

    # --- Test 2: exercise M/V/E tiling with ragged tiles, bf16 operands -----
    embed_size, vocab_size, batch, seq = 200, 640, 2, 50
    k1, k2, k3, key = jax.random.split(key, 4)
    bound = 1.0 / (embed_size ** 0.5)
    x = jax.random.normal(k1, (batch, seq, embed_size),
                          dtype=jnp.float32).astype(jnp.bfloat16)
    weight = jax.random.uniform(k2, (vocab_size, embed_size), minval=-bound,
                                maxval=bound, dtype=jnp.float32).astype(jnp.bfloat16)
    bias = jax.random.uniform(k3, (vocab_size,), minval=-bound,
                              maxval=bound, dtype=jnp.float32).astype(jnp.bfloat16)

    probs2 = jax.block_until_ready(
        output_linear(x, weight, bias, tile_m=64, tile_v=256, tile_k=128))
    xf, wf, bf = (a.astype(jnp.float32) for a in (x, weight, bias))
    ref2 = jax.nn.softmax(xf @ wf.T + bf, axis=-1)
    assert probs2.shape == (batch, seq, vocab_size)
    assert jnp.allclose(probs2.astype(jnp.float32), ref2, atol=1e-2, rtol=1e-2)
    assert jnp.allclose(jnp.sum(probs2.astype(jnp.float32), axis=-1), 1.0,
                        atol=1e-2)

    print("KERNEL_OK")
</pallas_src>

<mosaic_0001>
module attributes {stable_mosaic.version = 11 : i64} {
  func.func @_logits_stats_kernel(%arg0: i32, %arg1: i32, %arg2: i32, %arg3: memref<16x32xf32, #tpu.memory_space<vmem>>, %arg4: memref<128x32xf32, #tpu.memory_space<vmem>>, %arg5: memref<1x128xf32, #tpu.memory_space<vmem>>, %arg6: memref<16x128xf32, #tpu.memory_space<vmem>>, %arg7: memref<16x1xf32, #tpu.memory_space<vmem>>, %arg8: memref<16x1xf32, #tpu.memory_space<vmem>>, %arg9: memref<16x128xf32, #tpu.memory_space<vmem>>) attributes {dimension_semantics = [#tpu.dimension_semantics<parallel>, #tpu.dimension_semantics<arbitrary>, #tpu.dimension_semantics<arbitrary>], iteration_bounds = array<i64: 1, 1, 1>, scalar_prefetch = 0 : i64, scratch_operands = 1 : i64, tpu.core_type = #tpu.core_type<tc>, window_params = [{transform_indices = @transform_0, window_bounds = array<i64: 16, 32>}, {transform_indices = @transform_1, window_bounds = array<i64: 128, 32>}, {transform_indices = @transform_2, window_bounds = array<i64: 1, 128>}, {transform_indices = @transform_3, window_bounds = array<i64: 16, 128>}, {transform_indices = @transform_4, window_bounds = array<i64: 16, 1>}, {transform_indices = @transform_5, window_bounds = array<i64: 16, 1>}]} {
    %c0 = arith.constant 0 : index
    %c0_0 = arith.constant 0 : index
    %0 = vector.load %arg3[%c0, %c0_0] : memref<16x32xf32, #tpu.memory_space<vmem>>, vector<16x32xf32>
    %c0_1 = arith.constant 0 : index
    %c0_2 = arith.constant 0 : index
    %1 = vector.load %arg4[%c0_1, %c0_2] : memref<128x32xf32, #tpu.memory_space<vmem>>, vector<128x32xf32>
    %cst = arith.constant dense<0.000000e+00> : vector<16x128xf32>
    %2 = tpu.matmul %0, %1, %cst {dimension_numbers = #tpu.dot_dimension_numbers<[1], [1], [0], [0], [0, 0, 1, 0], [], []>} : vector<16x32xf32>, vector<128x32xf32>, vector<16x128xf32> -> vector<16x128xf32>
    %c0_i32 = arith.constant 0 : i32
    %3 = arith.cmpi eq, %arg2, %c0_i32 : i32
    %4 = arith.extui %3 : i1 to i32
    %c0_i32_3 = arith.constant 0 : i32
    %5 = arith.cmpi ne, %4, %c0_i32_3 : i32
    scf.if %5 {
      %c0_11 = arith.constant 0 : index
      %c0_12 = arith.constant 0 : index
      %17 = vector.load %arg5[%c0_11, %c0_12] : memref<1x128xf32, #tpu.memory_space<vmem>>, vector<1x128xf32>
      %18 = vector.shape_cast %17 : vector<1x128xf32> to vector<1x128xf32>
      %19 = vector.broadcast %18 : vector<1x128xf32> to vector<16x128xf32>
      %20 = arith.addf %2, %19 : vector<16x128xf32>
      %c0_13 = arith.constant 0 : index
      %c0_14 = arith.constant 0 : index
      %21 = vector.load %arg9[%c0_13, %c0_14] : memref<16x128xf32, #tpu.memory_space<vmem>>, vector<16x128xf32>
      tpu.vector_store %arg9[%c0_13, %c0_14], %20 {strides = array<i32>} : memref<16x128xf32, #tpu.memory_space<vmem>>, vector<16x128xf32>,
    } else {
    }
    %c0_i32_4 = arith.constant 0 : i32
    %6 = arith.cmpi ne, %arg2, %c0_i32_4 : i32
    %7 = arith.extui %6 : i1 to i32
    %c0_i32_5 = arith.constant 0 : i32
    %8 = arith.cmpi ne, %7, %c0_i32_5 : i32
    scf.if %8 {
      %c0_11 = arith.constant 0 : index
      %c0_12 = arith.constant 0 : index
      %17 = vector.load %arg9[%c0_11, %c0_12] : memref<16x128xf32, #tpu.memory_space<vmem>>, vector<16x128xf32>
      %18 = arith.addf %17, %2 : vector<16x128xf32>
      %c0_13 = arith.constant 0 : index
      %c0_14 = arith.constant 0 : index
      %19 = vector.load %arg9[%c0_13, %c0_14] : memref<16x128xf32, #tpu.memory_space<vmem>>, vector<16x128xf32>
      tpu.vector_store %arg9[%c0_13, %c0_14], %18 {strides = array<i32>} : memref<16x128xf32, #tpu.memory_space<vmem>>, vector<16x128xf32>,
    } else {
    }
    %c0_i32_6 = arith.constant 0 : i32
    %9 = arith.cmpi eq, %arg1, %c0_i32_6 : i32
    %c0_i32_7 = arith.constant 0 : i32
    %10 = arith.cmpi eq, %arg2, %c0_i32_7 : i32
    %11 = arith.andi %9, %10 : i1
    %12 = arith.extui %11 : i1 to i32
    %c0_i32_8 = arith.constant 0 : i32
    %13 = arith.cmpi ne, %12, %c0_i32_8 : i32
    scf.if %13 {
      %cst_11 = arith.constant 0xFF800000 : f32
      %17 = vector.broadcast %cst_11 : f32 to vector<16x1xf32>
      %c0_12 = arith.constant 0 : index
      %c0_13 = arith.constant 0 : index
      %18 = vector.load %arg7[%c0_12, %c0_13] : memref<16x1xf32, #tpu.memory_space<vmem>>, vector<16x1xf32>
      tpu.vector_store %arg7[%c0_12, %c0_13], %17 {strides = array<i32>} : memref<16x1xf32, #tpu.memory_space<vmem>>, vector<16x1xf32>,
      %cst_14 = arith.constant 0.000000e+00 : f32
      %19 = vector.broadcast %cst_14 : f32 to vector<16x1xf32>
      %c0_15 = arith.constant 0 : index
      %c0_16 = arith.constant 0 : index
      %20 = vector.load %arg8[%c0_15, %c0_16] : memref<16x1xf32, #tpu.memory_space<vmem>>, vector<16x1xf32>
      tpu.vector_store %arg8[%c0_15, %c0_16], %19 {strides = array<i32>} : memref<16x1xf32, #tpu.memory_space<vmem>>, vector<16x1xf32>,
    } else {
    }
    %c0_i32_9 = arith.constant 0 : i32
    %14 = arith.cmpi eq, %arg2, %c0_i32_9 : i32
    %15 = arith.extui %14 : i1 to i32
    %c0_i32_10 = arith.constant 0 : i32
    %16 = arith.cmpi ne, %15, %c0_i32_10 : i32
    scf.if %16 {
      %c0_11 = arith.constant 0 : index
      %c0_12 = arith.constant 0 : index
      %17 = vector.load %arg9[%c0_11, %c0_12] : memref<16x128xf32, #tpu.memory_space<vmem>>, vector<16x128xf32>
      %c0_13 = arith.constant 0 : index
      %c0_14 = arith.constant 0 : index
      %18 = vector.load %arg6[%c0_13, %c0_14] : memref<16x128xf32, #tpu.memory_space<vmem>>, vector<16x128xf32>
      tpu.vector_store %arg6[%c0_13, %c0_14], %17 {strides = array<i32>} : memref<16x128xf32, #tpu.memory_space<vmem>>, vector<16x128xf32>,
      %c0_15 = arith.constant 0 : index
      %c0_16 = arith.constant 0 : index
      %19 = vector.load %arg7[%c0_15, %c0_16] : memref<16x1xf32, #tpu.memory_space<vmem>>, vector<16x1xf32>
      %cst_17 = arith.constant dense<0xFF800000> : vector<16xf32>
      %20 = vector.multi_reduction <maximumf>, %17, %cst_17 [1] : vector<16x128xf32> to vector<16xf32>
      %21 = vector.shape_cast %20 : vector<16xf32> to vector<16x1xf32>
      %22 = arith.maximumf %19, %21 : vector<16x1xf32>
      %23 = arith.subf %19, %22 : vector<16x1xf32>
      %24 = math.exp %23 : vector<16x1xf32>
      %c0_18 = arith.constant 0 : index
      %c0_19 = arith.constant 0 : index
      %25 = vector.load %arg8[%c0_18, %c0_19] : memref<16x1xf32, #tpu.memory_space<vmem>>, vector<16x1xf32>
      %26 = arith.mulf %25, %24 : vector<16x1xf32>
      %27 = vector.broadcast %22 : vector<16x1xf32> to vector<16x128xf32>
      %28 = arith.subf %17, %27 : vector<16x128xf32>
      %29 = math.exp %28 : vector<16x128xf32>
      %cst_20 = arith.constant dense<0.000000e+00> : vector<16xf32>
      %30 = vector.multi_reduction <add>, %29, %cst_20 [1] : vector<16x128xf32> to vector<16xf32>
      %31 = vector.shape_cast %30 : vector<16xf32> to vector<16x1xf32>
      %32 = arith.addf %26, %31 : vector<16x1xf32>
      %c0_21 = arith.constant 0 : index
      %c0_22 = arith.constant 0 : index
      %33 = vector.load %arg8[%c0_21, %c0_22] : memref<16x1xf32, #tpu.memory_space<vmem>>, vector<16x1xf32>
      tpu.vector_store %arg8[%c0_21, %c0_22], %32 {strides = array<i32>} : memref<16x1xf32, #tpu.memory_space<vmem>>, vector<16x1xf32>,
      %c0_23 = arith.constant 0 : index
      %c0_24 = arith.constant 0 : index
      %34 = vector.load %arg7[%c0_23, %c0_24] : memref<16x1xf32, #tpu.memory_space<vmem>>, vector<16x1xf32>
      tpu.vector_store %arg7[%c0_23, %c0_24], %22 {strides = array<i32>} : memref<16x1xf32, #tpu.memory_space<vmem>>, vector<16x1xf32>,
    } else {
    }
    return
  }
  func.func @transform_0(%arg0: i32, %arg1: i32, %arg2: i32) -> (i32, i32) {
    %c0_i32 = arith.constant 0 : i32
    return %arg0, %arg2 : i32, i32
  }
  func.func @transform_1(%arg0: i32, %arg1: i32, %arg2: i32) -> (i32, i32) {
    %c0_i32 = arith.constant 0 : i32
    return %arg1, %arg2 : i32, i32
  }
  func.func @transform_2(%arg0: i32, %arg1: i32, %arg2: i32) -> (i32, i32) {
    %c0_i32 = arith.constant 0 : i32
    %c0_i32_0 = arith.constant 0 : i32
    return %c0_i32, %arg1 : i32, i32
  }
  func.func @transform_3(%arg0: i32, %arg1: i32, %arg2: i32) -> (i32, i32) {
    %c0_i32 = arith.constant 0 : i32
    return %arg0, %arg1 : i32, i32
  }
  func.func @transform_4(%arg0: i32, %arg1: i32, %arg2: i32) -> (i32, i32) {
    %c0_i32 = arith.constant 0 : i32
    %c0_i32_0 = arith.constant 0 : i32
    return %arg0, %c0_i32 : i32, i32
  }
  func.func @transform_5(%arg0: i32, %arg1: i32, %arg2: i32) -> (i32, i32) {
    %c0_i32 = arith.constant 0 : i32
    %c0_i32_0 = arith.constant 0 : i32
    return %arg0, %c0_i32 : i32, i32
  }
}

</mosaic_0001>

<llo_original>
// kernel: tpu_custom_call.1
$region0: #{tpu_custom_call.1}
  #allocation0 [shape = 'u32[]', space=smem, size = 0x4, offset = 0x4, fixed_abs, tag = 'smem constant byte address 0x4 - core index']
  #allocation1 [shape = 'u32[72,128]{1,0:T(1,128)}', space=vmem, size = 0x9000, scoped, tag = 'internal scratch']
  #allocation2 [shape = 'f32[16,128]{1,0:T(8,128)}', space=vmem, size = 0x2000, scoped, tag = 'scratch operand']
  %s0 = inlined_call_operand.vmem [shape: f32[16,32], index: 0, kind: input, shape index: {}]
  %s1 = inlined_call_operand.vmem [shape: f32[128,32], index: 1, kind: input, shape index: {}]
  %s2 = inlined_call_operand.vmem [shape: f32[1,128], index: 2, kind: input, shape index: {}]
  %s3 = inlined_call_operand.hbm [shape: f32[16,128], index: 3, kind: output, shape index: {0}]
  %s4 = inlined_call_operand.vmem [shape: f32[16,1], index: 4, kind: output, shape index: {1}]
  %s5 = inlined_call_operand.vmem [shape: f32[16,1], index: 5, kind: output, shape index: {2}]
  %6 = xla_tuple %s3, %s4, %s5
  %s7 = sld [smem:[#allocation0]]
  $region54: #{tpu_custom_call.1} parent=0
    _
  %s9 = ssub.s32 1, %s7
  %s10 = scalar_select 0, %s9, %s7
  $region1: #{tpu_custom_call.1} parent=0
    #allocation3 [shape = 'u8[8192]{0}', space=vmem, size = 0x2000, scoped, tag = 'output window, operand 0, single buffered']
    #allocation4 [shape = 's32[1]{0}', space=sflag, size = 0x4, scoped, tag = 'scoped memory for tpu_custom_call.1']
    %11 = vsyncpa [#allocation4], 0
    // Predicated region
    $region2: #{tpu_custom_call.1} parent=1 // pred_check
      _
    $region3: #{tpu_custom_call.1} parent=1 // pred_check_branch
      %13 = sbr.rel (0) target = $region5
    $region4: #{tpu_custom_call.1} parent=1 // pred_region
      _
    $region5: #{tpu_custom_call.1} parent=1 // pred_fallthru
      _
    // Predicated region
    $region6: #{tpu_custom_call.1} parent=1 // pred_check
      _
    $region7: #{tpu_custom_call.1} parent=1 // pred_check_branch
      %15 = sbr.rel (0) target = $region9
    $region8: #{tpu_custom_call.1} parent=1 // pred_region
      _
    $region9: #{tpu_custom_call.1} parent=1 // pred_fallthru
      _
    // Predicated region
    $region10: #{tpu_custom_call.1} parent=1 // pred_check
      _
    $region11: #{tpu_custom_call.1} parent=1 // pred_check_branch
      %17 = sbr.rel (0) target = $region13
    $region12: #{tpu_custom_call.1} parent=1 // pred_region
      _
    $region13: #{tpu_custom_call.1} parent=1 // pred_fallthru
      _
    %v18 = vld [vmem:[%s0] sm:$0xff]
    %v19 = vld [vmem:[%s0 + $0x8] sm:$0xff]
    %v20 = vld [vmem:[%s1] sm:$0xff]
    %v21 = vld [vmem:[%s1 + $0x8] sm:$0xff]
    %v22 = vld [vmem:[%s1 + $0x10] sm:$0xff]
    %v23 = vld [vmem:[%s1 + $0x18] sm:$0xff]
    %v24 = vld [vmem:[%s1 + $0x20] sm:$0xff]
    %v25 = vld [vmem:[%s1 + $0x28] sm:$0xff]
    %v26 = vld [vmem:[%s1 + $0x30] sm:$0xff]
    %v27 = vld [vmem:[%s1 + $0x38] sm:$0xff]
    %v28 = vld [vmem:[%s1 + $0x40] sm:$0xff]
    %v29 = vld [vmem:[%s1 + $0x48] sm:$0xff]
    %v30 = vld [vmem:[%s1 + $0x50] sm:$0xff]
    %v31 = vld [vmem:[%s1 + $0x58] sm:$0xff]
    %v32 = vld [vmem:[%s1 + $0x60] sm:$0xff]
    %v33 = vld [vmem:[%s1 + $0x68] sm:$0xff]
    %v34 = vld [vmem:[%s1 + $0x70] sm:$0xff]
    %v35 = vld [vmem:[%s1 + $0x78] sm:$0xff]
    %vm36 = vcmask 261120
    %v38 = vsel %vm36, %v18, 0
    %v41 = vsel %vm36, %v19, 0
    %v44 = vsel %vm36, %v20, 0
    %v47 = vsel %vm36, %v21, 0
    %v50 = vsel %vm36, %v22, 0
    %v53 = vsel %vm36, %v23, 0
    %v56 = vsel %vm36, %v24, 0
    %v59 = vsel %vm36, %v25, 0
    %v62 = vsel %vm36, %v26, 0
    %v65 = vsel %vm36, %v27, 0
    %v68 = vsel %vm36, %v28, 0
    %v71 = vsel %vm36, %v29, 0
    %v74 = vsel %vm36, %v30, 0
    %v77 = vsel %vm36, %v31, 0
    %v80 = vsel %vm36, %v32, 0
    %v83 = vsel %vm36, %v33, 0
    %v86 = vsel %vm36, %v34, 0
    %v89 = vsel %vm36, %v35, 0
    %91 = vmatpush.xpose.msra.mxu0 %v89
    %92 = vmatpush.xpose.msra.mxu0 %v86
    %93 = vmatpush.xpose.msra.mxu0 %v83
    %94 = vmatpush.xpose.msra.mxu0 %v80
    %95 = vmatpush.xpose.msra.mxu0 %v77
    %96 = vmatpush.xpose.msra.mxu0 %v74
    %97 = vmatpush.xpose.msra.mxu0 %v71
    %98 = vmatpush.xpose.msra.mxu0 %v68
    %99 = vmatpush.xpose.msra.mxu0 %v65
    %100 = vmatpush.xpose.msra.mxu0 %v62
    %101 = vmatpush.xpose.msra.mxu0 %v59
    %102 = vmatpush.xpose.msra.mxu0 %v56
    %103 = vmatpush.xpose.msra.mxu0 %v53
    %104 = vmatpush.xpose.msra.mxu0 %v50
    %105 = vmatpush.xpose.msra.mxu0 %v47
    %106 = vmatpush.xpose.msra.mxu0 %v44
    %107 = vmatmul.f32.gmra.mxu0 %v38
    %v108 = vpop.f32.mrf.mxu0
    %v109 = vadd.f32 0.0, %v108
    %110 = vmatmul.f32.gmra.mxu0 %v41
    %v111 = vpop.f32.mrf.mxu0
    %v112 = vadd.f32 0.0, %v111
    %113 = vdwg.mxu0
    %p114 = scmp.eq.s32.totalorder 0, 0
    // Predicated region
    $region14: #{tpu_custom_call.1} parent=1 // pred_check
      %p115 = pneg %p114
    $region15: #{tpu_custom_call.1} parent=1 // pred_check_branch
      %117 = sbr.rel (%p115) target = $region17
    $region16: #{tpu_custom_call.1} parent=1 // pred_region
      %v118 = vld [vmem:[%s2] sm:$0x1]
      %v120 = vperm.slane %v118, 0
      %v122 = vadd.f32 %v109, %v120
      %v123 = vadd.f32 %v112, %v120
      %124 = vst [vmem:[#allocation2] sm:$0xff] %v122
      %125 = vst [vmem:[#allocation2 + $0x8] sm:$0xff] %v123
    $region17: #{tpu_custom_call.1} parent=1 // pred_fallthru
      _
    %p126 = scmp.ne.s32.totalorder 0, 0
    // Predicated region
    $region18: #{tpu_custom_call.1} parent=1 // pred_check
      %p127 = pneg %p126
    $region19: #{tpu_custom_call.1} parent=1 // pred_check_branch
      %129 = sbr.rel (%p127) target = $region21
    $region20: #{tpu_custom_call.1} parent=1 // pred_region
      %v130 = vld [vmem:[#allocation2] sm:$0xff]
      %v131 = vld [vmem:[#allocation2 + $0x8] sm:$0xff]
      %v132 = vadd.f32 %v130, %v109
      %v133 = vadd.f32 %v131, %v112
      %134 = vst [vmem:[#allocation2] sm:$0xff] %v132
      %135 = vst [vmem:[#allocation2 + $0x8] sm:$0xff] %v133
    $region21: #{tpu_custom_call.1} parent=1 // pred_fallthru
      _
    %p136 = scmp.eq.s32.totalorder 0, 0
    %p137 = pnand %p136, %p114
    %p138 = pneg %p137
    // Predicated region
    $region22: #{tpu_custom_call.1} parent=1 // pred_check
      _
    $region23: #{tpu_custom_call.1} parent=1 // pred_check_branch
      %140 = sbr.rel (%p137) target = $region25
    $region24: #{tpu_custom_call.1} parent=1 // pred_region
      %vm141 = vcmask 7168
      %142 = vst.msk [vmem:[%s4] sm:$0xff] %vm141, -inf
      %143 = vst.msk [vmem:[%s4 + $0x8] sm:$0xff] %vm141, -inf
      %144 = vst.msk [vmem:[%s5] sm:$0xff] %vm141, 0.0
      %145 = vst.msk [vmem:[%s5 + $0x8] sm:$0xff] %vm141, 0.0
    $region25: #{tpu_custom_call.1} parent=1 // pred_fallthru
      _
    // Predicated region
    $region26: #{tpu_custom_call.1} parent=1 // pred_check
      %p146 = pneg %p114
    $region27: #{tpu_custom_call.1} parent=1 // pred_check_branch
      %148 = sbr.rel (%p146) target = $region29
    $region28: #{tpu_custom_call.1} parent=1 // pred_region
      %v149 = vld [vmem:[#allocation2] sm:$0xff]
      %v150 = vld [vmem:[#allocation2 + $0x8] sm:$0xff]
      %151 = vst [vmem:[#allocation3] sm:$0xff] %v149
      %152 = vst [vmem:[#allocation3 + $0x8] sm:$0xff] %v150
      %v153 = vld [vmem:[%s4] sm:$0xff]
      %v154 = vld [vmem:[%s4 + $0x8] sm:$0xff]
      %155 = vmax.xlane.f32.xlu0 %v149
      %v156 = vpop.xlane.xlu0 %155
      %157 = vmax.xlane.f32.xlu0 %v150
      %v158 = vpop.xlane.xlu0 %157
      %v159 = vmax.f32 %v153, %v156
      %v160 = vmax.f32 %v154, %v158
      %v161 = vsub.f32 %v153, %v159
      %v162 = vsub.f32 %v154, %v160
      %v163 = vmul.f32 %v161, 1.442695
      %v164 = vpow.pop %v163
      %v165 = vmul.f32 %v162, 1.442695
      %v166 = vpow.pop %v165
      %v167 = vld [vmem:[%s5] sm:$0xff]
      %v168 = vld [vmem:[%s5 + $0x8] sm:$0xff]
      %v169 = vmul.f32 %v167, %v164
      %v170 = vmul.f32 %v168, %v166
      %172 = vset.pattern.permute.xlu0 0
      %173 = vperm.xlu0 %172, %v159
      %v174 = vpop.permute.xlu0 %173
      %177 = vset.pattern.permute.xlu0 0
      %178 = vperm.xlu0 %177, %v160
      %v179 = vpop.permute.xlu0 %178
      %v181 = vsub.f32 %v149, %v174
      %v182 = vsub.f32 %v150, %v179
      %v183 = vmul.f32 %v181, 1.442695
      %v184 = vpow.pop %v183
      %v185 = vmul.f32 %v182, 1.442695
      %v186 = vpow.pop %v185
      %187 = vadd.xlane.f32.xlu0 %v184
      %v188 = vpop.xlane.xlu0 %187
      %189 = vadd.xlane.f32.xlu0 %v186
      %v190 = vpop.xlane.xlu0 %189
      %v191 = vadd.f32 %v169, %v188
      %v192 = vadd.f32 %v170, %v190
      %vm193 = vcmask 7168
      %194 = vst.msk [vmem:[%s5] sm:$0xff] %vm193, %v191
      %195 = vst.msk [vmem:[%s5 + $0x8] sm:$0xff] %vm193, %v192
      %196 = vst.msk [vmem:[%s4] sm:$0xff] %vm193, %v159
      %197 = vst.msk [vmem:[%s4 + $0x8] sm:$0xff] %vm193, %v160
    $region29: #{tpu_custom_call.1} parent=1 // pred_fallthru
      _
    // Predicated region
    $region30: #{tpu_custom_call.1} parent=1 // pred_check
      _
    $region31: #{tpu_custom_call.1} parent=1 // pred_check_branch
      %199 = sbr.rel (0) target = $region33
    $region32: #{tpu_custom_call.1} parent=1 // pred_region
      %201 = vsyncadd [#allocation4], 0
      %s202 = sshll.u32 [#allocation3], 4
      %s203 = int_to_ptr.vmem [resolvable:$true] %s202
      %s204 = sshll.u32 %s3, 4
      %s205 = int_to_ptr.hbm [resolvable:$true] %s204
      %210 = dma.vmem_to_hbm [thread:$0]  %s203, 256, %s205, [#allocation4], 128, 128, 8
    $region33: #{tpu_custom_call.1} parent=1 // pred_fallthru
      _
    // Predicated region
    $region34: #{tpu_custom_call.1} parent=1 // pred_check
      _
    $region35: #{tpu_custom_call.1} parent=1 // pred_check_branch
      %212 = sbr.rel (0) target = $region37
    $region36: #{tpu_custom_call.1} parent=1 // pred_region
      _
    $region37: #{tpu_custom_call.1} parent=1 // pred_fallthru
      _
    // Predicated region
    $region38: #{tpu_custom_call.1} parent=1 // pred_check
      _
    $region39: #{tpu_custom_call.1} parent=1 // pred_check_branch
      %214 = sbr.rel (0) target = $region41
    $region40: #{tpu_custom_call.1} parent=1 // pred_region
      _
    $region41: #{tpu_custom_call.1} parent=1 // pred_fallthru
      _
    // Predicated region
    $region42: #{tpu_custom_call.1} parent=1 // pred_check
      _
    $region43: #{tpu_custom_call.1} parent=1 // pred_check_branch
      %216 = sbr.rel (0) target = $region45
    $region44: #{tpu_custom_call.1} parent=1 // pred_region
      %218 = dma.done [#allocation4], 256
    $region45: #{tpu_custom_call.1} parent=1 // pred_fallthru
      _
    // Predicated region
    $region46: #{tpu_custom_call.1} parent=1 // pred_check
      _
    $region47: #{tpu_custom_call.1} parent=1 // pred_check_branch
      %220 = sbr.rel (0) target = $region49
    $region48: #{tpu_custom_call.1} parent=1 // pred_region
      _
    $region49: #{tpu_custom_call.1} parent=1 // pred_fallthru
      _
    // Predicated region
    $region50: #{tpu_custom_call.1} parent=1 // pred_check
      _
    $region51: #{tpu_custom_call.1} parent=1 // pred_check_branch
      %222 = sbr.rel (0) target = $region53
    $region52: #{tpu_custom_call.1} parent=1 // pred_region
      _
    $region53: #{tpu_custom_call.1} parent=1 // pred_fallthru
      _
    %223 = vsyncpa [#allocation4], 1

</llo_original>
